<compile_context>
chip_gen: v5e
topology: v5e:2x2
jax: 0.10.0
libtpu: 0.0.40
codegen_flags: <defaults>
</compile_context>

<pallas_src>
import jax
import jax.numpy as jnp
from jax.experimental import pallas as pl
from jax.experimental.pallas import tpu as pltpu

_EPS = 1e-5  # nn.BatchNorm2d default eps

_FUSED_BLOCK_BUDGET = 4 << 20       # f32-equivalent bytes for one (N, tc, HW) slab
_TWO_PHASE_BLOCK_BUDGET = 8 << 20   # f32-equivalent bytes for one (1, tc, HW) slab


def _valid_channel_tiles(c):
    """Channel tiles that divide C and are sublane-legal (multiple of 8 or == C)."""
    return [t for t in range(1, c + 1) if c % t == 0 and (t % 8 == 0 or t == c)]


def _vmem_limit(block_bytes, bufs):
    """Explicit scoped-VMEM request: `bufs` blocks in flight plus slack."""
    return int(min(64 << 20, max(16 << 20, bufs * block_bytes + (2 << 20))))


# ---------------------------------------------------------------------------
# Fast path: fused single-pass kernel (whole batch + spatial slab per c-tile).
# ---------------------------------------------------------------------------
def _cbn_fused_kernel(x_ref, g_ref, b_ref, o_ref):
    # x_ref: (N, TC, HW), g_ref/b_ref: (N, TC, 1), o_ref: (N, TC, HW)
    n, _, hw = x_ref.shape
    inv_count = 1.0 / float(n * hw)

    xf = x_ref[...].astype(jnp.float32)
    s1 = jnp.sum(xf, axis=(0, 2), keepdims=True)        # (1, TC, 1)
    s2 = jnp.sum(xf * xf, axis=(0, 2), keepdims=True)   # (1, TC, 1)
    mean = s1 * inv_count
    var = jnp.maximum(s2 * inv_count - mean * mean, 0.0)  # biased (training) var
    inv_std = jax.lax.rsqrt(var + _EPS)

    # Fold the conditional affine into per-(sample, channel) scale/shift so the
    # big tile only sees one fused mul + add.
    gamma = g_ref[...].astype(jnp.float32)               # (N, TC, 1)
    beta = b_ref[...].astype(jnp.float32)                # (N, TC, 1)
    scale = gamma * inv_std                              # (N, TC, 1)
    shift = beta - mean * scale                          # (N, TC, 1)

    o_ref[...] = (xf * scale + shift).astype(o_ref.dtype)


# ---------------------------------------------------------------------------
# Fallback path: two-phase (stats accumulation, then elementwise normalize).
# ---------------------------------------------------------------------------
def _cbn_stats_kernel(x_ref, s1_ref, s2_ref):
    # x_ref: (1, TC, HW); s1_ref/s2_ref: (1, TC, 1) accumulated across batch axis.
    @pl.when(pl.program_id(1) == 0)
    def _():
        s1_ref[...] = jnp.zeros_like(s1_ref)
        s2_ref[...] = jnp.zeros_like(s2_ref)

    xf = x_ref[...].astype(jnp.float32)
    s1_ref[...] += jnp.sum(xf, axis=(0, 2), keepdims=True)
    s2_ref[...] += jnp.sum(xf * xf, axis=(0, 2), keepdims=True)


def _cbn_normalize_kernel(x_ref, scale_ref, shift_ref, o_ref):
    # x_ref/o_ref: (1, TC, HW); scale_ref/shift_ref: (1, TC, 1)
    xf = x_ref[...].astype(jnp.float32)
    o_ref[...] = (xf * scale_ref[...] + shift_ref[...]).astype(o_ref.dtype)


# ---------------------------------------------------------------------------
# Wrapper
# ---------------------------------------------------------------------------
def conditional_batch_norm_2d(x, labels, embed_weight, num_features,
                              *, force_two_phase=False):
    """Forward pass of ConditionalBatchNorm2d.

    Args:
      x: (N, C, H, W) input, NCHW like PyTorch.
      labels: (N,) int32 class ids.
      embed_weight: (num_classes, 2*num_features) embedding table.
      num_features: C.
      force_two_phase: force the large-feature-map fallback path (testing).
    Returns:
      (N, C, H, W) output, same dtype as x.
    """
    N, C, H, W = x.shape
    assert C == num_features
    HW = H * W

    # Glue (plain JAX, tiny tensors): embedding lookup + chunk.
    emb = embed_weight[labels]                 # (N, 2C)
    gamma = emb[:, :num_features]              # (N, C)
    beta = emb[:, num_features:]               # (N, C)

    # Free view of NCHW -> (N, C, HW); no HBM data movement.
    x_v = x.reshape(N, C, HW)
    tiles = _valid_channel_tiles(C)

    # ---------------- Path 1: fused single pass ----------------
    fused_fit = [t for t in tiles if N * t * HW * 4 <= _FUSED_BLOCK_BUDGET]
    if fused_fit and not force_two_phase:
        tc = max(fused_fit)
        block_bytes = N * tc * HW * 4
        out = pl.pallas_call(
            _cbn_fused_kernel,
            out_shape=jax.ShapeDtypeStruct((N, C, HW), x.dtype),
            grid=(C // tc,),
            in_specs=[
                pl.BlockSpec((N, tc, HW), lambda c: (0, c, 0)),
                pl.BlockSpec((N, tc, 1), lambda c: (0, c, 0)),
                pl.BlockSpec((N, tc, 1), lambda c: (0, c, 0)),
            ],
            out_specs=pl.BlockSpec((N, tc, HW), lambda c: (0, c, 0)),
            compiler_params=pltpu.CompilerParams(
                dimension_semantics=("parallel",),
                vmem_limit_bytes=_vmem_limit(block_bytes, 6),
            ),
        )(x_v, gamma[..., None], beta[..., None])
        return out.reshape(N, C, H, W)

    # ---------------- Path 2: two-phase fallback ----------------
    tp_fit = [t for t in tiles if t * HW * 4 <= _TWO_PHASE_BLOCK_BUDGET]
    tc = max(tp_fit) if tp_fit else min(tiles)
    # TODO(synk): also tile the H*W axis if even a single (1, min_tc, HW) slab
    # exceeds VMEM (extremely large per-sample feature maps).
    block_bytes = tc * HW * 4

    s1, s2 = pl.pallas_call(
        _cbn_stats_kernel,
        out_shape=(jax.ShapeDtypeStruct((1, C, 1), jnp.float32),
                   jax.ShapeDtypeStruct((1, C, 1), jnp.float32)),
        grid=(C // tc, N),
        in_specs=[pl.BlockSpec((1, tc, HW), lambda c, n: (n, c, 0))],
        out_specs=(pl.BlockSpec((1, tc, 1), lambda c, n: (0, c, 0)),
                   pl.BlockSpec((1, tc, 1), lambda c, n: (0, c, 0))),
        compiler_params=pltpu.CompilerParams(
            dimension_semantics=("parallel", "arbitrary"),
            vmem_limit_bytes=_vmem_limit(block_bytes, 4),
        ),
    )(x_v)

    # Tiny per-(N, C) parameter math in plain JAX.
    inv_count = 1.0 / float(N * HW)
    mean = s1[0, :, 0] * inv_count                                  # (C,)
    var = jnp.maximum(s2[0, :, 0] * inv_count - mean * mean, 0.0)   # (C,)
    inv_std = jax.lax.rsqrt(var + _EPS)                             # (C,)
    scale = gamma.astype(jnp.float32) * inv_std[None, :]            # (N, C)
    shift = beta.astype(jnp.float32) - mean[None, :] * scale        # (N, C)

    out = pl.pallas_call(
        _cbn_normalize_kernel,
        out_shape=jax.ShapeDtypeStruct((N, C, HW), x.dtype),
        grid=(C // tc, N),
        in_specs=[
            pl.BlockSpec((1, tc, HW), lambda c, n: (n, c, 0)),
            pl.BlockSpec((1, tc, 1), lambda c, n: (n, c, 0)),
            pl.BlockSpec((1, tc, 1), lambda c, n: (n, c, 0)),
        ],
        out_specs=pl.BlockSpec((1, tc, HW), lambda c, n: (n, c, 0)),
        compiler_params=pltpu.CompilerParams(
            dimension_semantics=("parallel", "parallel"),
            vmem_limit_bytes=_vmem_limit(block_bytes, 5),
        ),
    )(x_v, scale[..., None], shift[..., None])
    return out.reshape(N, C, H, W)


def _reference(x, labels, embed_weight, num_features):
    # Pure-JAX reference of the PyTorch forward (training-mode BN).
    mean = jnp.mean(x, axis=(0, 2, 3), keepdims=True)
    var = jnp.mean((x - mean) ** 2, axis=(0, 2, 3), keepdims=True)
    x_hat = (x - mean) / jnp.sqrt(var + _EPS)
    emb = embed_weight[labels]
    gamma = emb[:, :num_features].reshape(-1, num_features, 1, 1)
    beta = emb[:, num_features:].reshape(-1, num_features, 1, 1)
    return gamma * x_hat + beta


if __name__ == "__main__":
    num_features = 4
    num_classes = 6
    N, C, H, W = 2, num_features, 16, 16

    key = jax.random.PRNGKey(0)
    kx, kl, ke = jax.random.split(key, 3)

    x = jax.random.normal(kx, (N, C, H, W), dtype=jnp.float32)
    labels = jax.random.randint(kl, (N,), 0, num_classes, dtype=jnp.int32)

    # Deterministic parameter init matching the PyTorch __init__:
    #   embed.weight[:, :C] ~ Normal(1, 0.02); embed.weight[:, C:] = 0
    gamma_init = 1.0 + 0.02 * jax.random.normal(
        ke, (num_classes, num_features), dtype=jnp.float32)
    beta_init = jnp.zeros((num_classes, num_features), dtype=jnp.float32)
    embed_weight = jnp.concatenate([gamma_init, beta_init], axis=1)

    ref = _reference(x, labels, embed_weight, num_features)

    # Fast fused path.
    out_fused = jax.block_until_ready(
        conditional_batch_norm_2d(x, labels, embed_weight, num_features))
    assert out_fused.shape == (N, C, H, W)
    assert jnp.allclose(out_fused, ref, atol=1e-5, rtol=1e-5)

    # Large-feature-map fallback path (forced, same small shapes).
    out_tp = jax.block_until_ready(
        conditional_batch_norm_2d(x, labels, embed_weight, num_features,
                                  force_two_phase=True))
    assert jnp.allclose(out_tp, ref, atol=1e-5, rtol=1e-5)

    print("KERNEL_OK")
</pallas_src>

<mosaic_0001>
module attributes {stable_mosaic.version = 11 : i64} {
  func.func @_cbn_fused_kernel(%arg0: i32, %arg1: memref<2x4x256xf32, #tpu.memory_space<vmem>>, %arg2: memref<2x4x1xf32, #tpu.memory_space<vmem>>, %arg3: memref<2x4x1xf32, #tpu.memory_space<vmem>>, %arg4: memref<2x4x256xf32, #tpu.memory_space<vmem>>) attributes {dimension_semantics = [#tpu.dimension_semantics<parallel>], iteration_bounds = array<i64: 1>, scalar_prefetch = 0 : i64, scratch_operands = 0 : i64, tpu.core_type = #tpu.core_type<tc>, window_params = [{transform_indices = @transform_0, window_bounds = array<i64: 2, 4, 256>}, {transform_indices = @transform_1, window_bounds = array<i64: 2, 4, 1>}, {transform_indices = @transform_2, window_bounds = array<i64: 2, 4, 1>}, {transform_indices = @transform_3, window_bounds = array<i64: 2, 4, 256>}]} {
    %c0 = arith.constant 0 : index
    %c0_0 = arith.constant 0 : index
    %c0_1 = arith.constant 0 : index
    %0 = vector.load %arg1[%c0, %c0_0, %c0_1] : memref<2x4x256xf32, #tpu.memory_space<vmem>>, vector<2x4x256xf32>
    %cst = arith.constant dense<0.000000e+00> : vector<4xf32>
    %1 = vector.multi_reduction <add>, %0, %cst [0, 2] : vector<2x4x256xf32> to vector<4xf32>
    %2 = vector.shape_cast %1 : vector<4xf32> to vector<1x4x1xf32>
    %3 = arith.mulf %0, %0 : vector<2x4x256xf32>
    %cst_2 = arith.constant dense<0.000000e+00> : vector<4xf32>
    %4 = vector.multi_reduction <add>, %3, %cst_2 [0, 2] : vector<2x4x256xf32> to vector<4xf32>
    %5 = vector.shape_cast %4 : vector<4xf32> to vector<1x4x1xf32>
    %cst_3 = arith.constant 0.001953125 : f32
    %6 = vector.broadcast %cst_3 : f32 to vector<1x4x1xf32>
    %7 = arith.mulf %2, %6 : vector<1x4x1xf32>
    %cst_4 = arith.constant 0.001953125 : f32
    %8 = vector.broadcast %cst_4 : f32 to vector<1x4x1xf32>
    %9 = arith.mulf %5, %8 : vector<1x4x1xf32>
    %10 = arith.mulf %7, %7 : vector<1x4x1xf32>
    %11 = arith.subf %9, %10 : vector<1x4x1xf32>
    %cst_5 = arith.constant 0.000000e+00 : f32
    %12 = vector.broadcast %cst_5 : f32 to vector<1x4x1xf32>
    %13 = arith.maximumf %11, %12 : vector<1x4x1xf32>
    %cst_6 = arith.constant 9.99999974E-6 : f32
    %14 = vector.broadcast %cst_6 : f32 to vector<1x4x1xf32>
    %15 = arith.addf %13, %14 : vector<1x4x1xf32>
    %16 = math.rsqrt %15 : vector<1x4x1xf32>
    %c0_7 = arith.constant 0 : index
    %c0_8 = arith.constant 0 : index
    %c0_9 = arith.constant 0 : index
    %17 = vector.load %arg2[%c0_7, %c0_8, %c0_9] : memref<2x4x1xf32, #tpu.memory_space<vmem>>, vector<2x4x1xf32>
    %c0_10 = arith.constant 0 : index
    %c0_11 = arith.constant 0 : index
    %c0_12 = arith.constant 0 : index
    %18 = vector.load %arg3[%c0_10, %c0_11, %c0_12] : memref<2x4x1xf32, #tpu.memory_space<vmem>>, vector<2x4x1xf32>
    %19 = vector.broadcast %16 : vector<1x4x1xf32> to vector<2x4x1xf32>
    %20 = arith.mulf %17, %19 : vector<2x4x1xf32>
    %21 = vector.broadcast %7 : vector<1x4x1xf32> to vector<2x4x1xf32>
    %22 = arith.mulf %21, %20 : vector<2x4x1xf32>
    %23 = arith.subf %18, %22 : vector<2x4x1xf32>
    %24 = vector.broadcast %20 : vector<2x4x1xf32> to vector<2x4x256xf32>
    %25 = arith.mulf %0, %24 : vector<2x4x256xf32>
    %26 = vector.broadcast %23 : vector<2x4x1xf32> to vector<2x4x256xf32>
    %27 = arith.addf %25, %26 : vector<2x4x256xf32>
    %c0_13 = arith.constant 0 : index
    %c0_14 = arith.constant 0 : index
    %c0_15 = arith.constant 0 : index
    %28 = vector.load %arg4[%c0_13, %c0_14, %c0_15] : memref<2x4x256xf32, #tpu.memory_space<vmem>>, vector<2x4x256xf32>
    tpu.vector_store %arg4[%c0_13, %c0_14, %c0_15], %27 {strides = array<i32>} : memref<2x4x256xf32, #tpu.memory_space<vmem>>, vector<2x4x256xf32>,
    return
  }
  func.func @transform_0(%arg0: i32) -> (i32, i32, i32) {
    %c0_i32 = arith.constant 0 : i32
    %c0_i32_0 = arith.constant 0 : i32
    %c0_i32_1 = arith.constant 0 : i32
    return %c0_i32, %arg0, %c0_i32_0 : i32, i32, i32
  }
  func.func @transform_1(%arg0: i32) -> (i32, i32, i32) {
    %c0_i32 = arith.constant 0 : i32
    %c0_i32_0 = arith.constant 0 : i32
    %c0_i32_1 = arith.constant 0 : i32
    return %c0_i32, %arg0, %c0_i32_0 : i32, i32, i32
  }
  func.func @transform_2(%arg0: i32) -> (i32, i32, i32) {
    %c0_i32 = arith.constant 0 : i32
    %c0_i32_0 = arith.constant 0 : i32
    %c0_i32_1 = arith.constant 0 : i32
    return %c0_i32, %arg0, %c0_i32_0 : i32, i32, i32
  }
  func.func @transform_3(%arg0: i32) -> (i32, i32, i32) {
    %c0_i32 = arith.constant 0 : i32
    %c0_i32_0 = arith.constant 0 : i32
    %c0_i32_1 = arith.constant 0 : i32
    return %c0_i32, %arg0, %c0_i32_0 : i32, i32, i32
  }
}

</mosaic_0001>

<llo_original>
// kernel: tpu_custom_call.1
$region0: #{tpu_custom_call.1}
  #allocation0 [shape = 'u32[]', space=smem, size = 0x4, offset = 0x4, fixed_abs, tag = 'smem constant byte address 0x4 - core index']
  #allocation1 [shape = 'u32[72,128]{1,0:T(1,128)}', space=vmem, size = 0x9000, scoped, tag = 'internal scratch']
  %s0 = inlined_call_operand.vmem [shape: f32[2,4,256], index: 0, kind: input, shape index: {}]
  %s1 = inlined_call_operand.vmem [shape: f32[2,4,1], index: 1, kind: input, shape index: {}]
  %s2 = inlined_call_operand.vmem [shape: f32[2,4,1], index: 2, kind: input, shape index: {}]
  %s3 = inlined_call_operand.hbm [shape: f32[2,4,256], index: 3, kind: output, shape index: {}]
  %s4 = sld [smem:[#allocation0]]
  $region22: #{tpu_custom_call.1} parent=0
    _
  %s6 = ssub.s32 1, %s4
  %s7 = scalar_select 0, %s6, %s4
  $region1: #{tpu_custom_call.1} parent=0
    #allocation2 [shape = 'u8[8192]{0}', space=vmem, size = 0x2000, scoped, tag = 'output window, operand 0, single buffered']
    #allocation3 [shape = 's32[1]{0}', space=sflag, size = 0x4, scoped, tag = 'scoped memory for tpu_custom_call.1']
    %8 = vsyncpa [#allocation3], 0
    // Predicated region
    $region2: #{tpu_custom_call.1} parent=1 // pred_check
      _
    $region3: #{tpu_custom_call.1} parent=1 // pred_check_branch
      %10 = sbr.rel (0) target = $region5
    $region4: #{tpu_custom_call.1} parent=1 // pred_region
      _
    $region5: #{tpu_custom_call.1} parent=1 // pred_fallthru
      _
    // Predicated region
    $region6: #{tpu_custom_call.1} parent=1 // pred_check
      _
    $region7: #{tpu_custom_call.1} parent=1 // pred_check_branch
      %12 = sbr.rel (0) target = $region9
    $region8: #{tpu_custom_call.1} parent=1 // pred_region
      _
    $region9: #{tpu_custom_call.1} parent=1 // pred_fallthru
      _
    // Predicated region
    $region10: #{tpu_custom_call.1} parent=1 // pred_check
      _
    $region11: #{tpu_custom_call.1} parent=1 // pred_check_branch
      %14 = sbr.rel (0) target = $region13
    $region12: #{tpu_custom_call.1} parent=1 // pred_region
      _
    $region13: #{tpu_custom_call.1} parent=1 // pred_fallthru
      _
    %v15 = vld [vmem:[%s0] sm:$0xff]
    %v16 = vld [vmem:[%s0 + $0x8] sm:$0xff]
    %19 = vst [vmem:[#allocation1] ss:$2 sm:$0xff] %v15
    %v20 = vld.sshfl [vmem:[#allocation1] sm:$0xff pattern:$0x75316420]
    %v21 = vld.sshfl [vmem:[#allocation1 + $0x8] sm:$0xff pattern:$0x75316420]
    %s22 = scalar_lea.vmem [#allocation1], 16
    %23 = vst [vmem:[%s22] ss:$2 sm:$0xff] %v16
    %v24 = vld.sshfl [vmem:[#allocation1 + $0x10] sm:$0xff pattern:$0x75316420]
    %v25 = vld.sshfl [vmem:[#allocation1 + $0x18] sm:$0xff pattern:$0x75316420]
    %vm30 = vcmask 1043456
    %v31 = vsel %vm30, %v20, 0.0
    %v32 = vsel %vm30, %v21, 0.0
    %v33 = vadd.f32 %v31, %v32
    %v34 = vsel %vm30, %v24, 0.0
    %v35 = vadd.f32 %v33, %v34
    %v36 = vsel %vm30, %v25, 0.0
    %v37 = vadd.f32 %v35, %v36
    %38 = vadd.xlane.f32.xlu0 %v37
    %v39 = vpop.xlane.xlu0 %38
    %v40 = vmul.f32 %v15, %v15
    %v41 = vmul.f32 %v16, %v16
    %44 = vst [vmem:[#allocation1] ss:$2 sm:$0xff] %v40
    %v45 = vld.sshfl [vmem:[#allocation1] sm:$0xff pattern:$0x75316420]
    %v46 = vld.sshfl [vmem:[#allocation1 + $0x8] sm:$0xff pattern:$0x75316420]
    %s47 = scalar_lea.vmem [#allocation1], 16
    %48 = vst [vmem:[%s47] ss:$2 sm:$0xff] %v41
    %v49 = vld.sshfl [vmem:[#allocation1 + $0x10] sm:$0xff pattern:$0x75316420]
    %v50 = vld.sshfl [vmem:[#allocation1 + $0x18] sm:$0xff pattern:$0x75316420]
    %v55 = vsel %vm30, %v45, 0.0
    %v56 = vsel %vm30, %v46, 0.0
    %v57 = vadd.f32 %v55, %v56
    %v58 = vsel %vm30, %v49, 0.0
    %v59 = vadd.f32 %v57, %v58
    %v60 = vsel %vm30, %v50, 0.0
    %v61 = vadd.f32 %v59, %v60
    %62 = vadd.xlane.f32.xlu0 %v61
    %v63 = vpop.xlane.xlu0 %62
    %v64 = vmul.f32 %v39, 0.001953125
    %v65 = vmul.f32 %v63, 0.001953125
    %v66 = vmul.f32 %v64, %v64
    %v67 = vsub.f32 %v65, %v66
    %v68 = vmax.f32 %v67, 0.0
    %v69 = vadd.f32 %v68, 1e-05
    %v70 = vrsqrt.pop %v69
    %v71 = vmul.f32 %v70, %v69
    %v72 = vmul.f32 %v71, %v70
    %v73 = vmul.f32 0.5, %v72
    %v74 = vsub.f32 1.5, %v73
    %v75 = vmul.f32 %v70, %v74
    %vm76 = vweird.f32 %v69
    %vm77 = vweird.f32 %v70
    %vm78 = vmor %vm76, %vm77
    %v79 = vsel %vm78, %v70, %v75
    %v80 = vld [vmem:[%s1] sm:$0xf]
    %v81 = vld [vmem:[%s1 + $0x4] sm:$0xf]
    %v82 = vld [vmem:[%s2] sm:$0xf]
    %v83 = vld [vmem:[%s2 + $0x4] sm:$0xf]
    %v84 = vmul.f32 %v80, %v79
    %v85 = vmul.f32 %v81, %v79
    %v86 = vmul.f32 %v64, %v84
    %v87 = vmul.f32 %v64, %v85
    %v88 = vsub.f32 %v82, %v86
    %v89 = vsub.f32 %v83, %v87
    %91 = vset.pattern.permute.xlu0 0
    %92 = vperm.xlu0 %91, %v84
    %v93 = vpop.permute.xlu0 %92
    %95 = vset.pattern.permute.xlu0 0
    %96 = vperm.xlu0 %95, %v85
    %v97 = vpop.permute.xlu0 %96
    %v99 = vunpack.c.l.s4 839922192
    %v100 = vunpack.c.0.s8 %v99
    %v101 = vperm.slane %v93, %v100
    %v103 = vunpack.c.l.s4 839922192
    %v104 = vunpack.c.0.s8 %v103
    %v105 = vperm.slane %v97, %v104
    %v108 = vmul.f32 %v15, %v101
    %v109 = vmul.f32 %v16, %v105
    %111 = vset.pattern.permute.xlu0 0
    %112 = vperm.xlu0 %111, %v88
    %v113 = vpop.permute.xlu0 %112
    %115 = vset.pattern.permute.xlu0 0
    %116 = vperm.xlu0 %115, %v89
    %v117 = vpop.permute.xlu0 %116
    %v119 = vunpack.c.l.s4 839922192
    %v120 = vunpack.c.0.s8 %v119
    %v121 = vperm.slane %v113, %v120
    %v123 = vunpack.c.l.s4 839922192
    %v124 = vunpack.c.0.s8 %v123
    %v125 = vperm.slane %v117, %v124
    %v128 = vadd.f32 %v108, %v121
    %v129 = vadd.f32 %v109, %v125
    %130 = vst [vmem:[#allocation2] sm:$0xff] %v128
    %131 = vst [vmem:[#allocation2 + $0x8] sm:$0xff] %v129
    // Predicated region
    $region14: #{tpu_custom_call.1} parent=1 // pred_check
      _
    $region15: #{tpu_custom_call.1} parent=1 // pred_check_branch
      %133 = sbr.rel (0) target = $region17
    $region16: #{tpu_custom_call.1} parent=1 // pred_region
      %135 = vsyncadd [#allocation3], 0
      %s136 = sshll.u32 [#allocation2], 4
      %s137 = int_to_ptr.vmem [resolvable:$true] %s136
      %s138 = sshll.u32 %s3, 4
      %s139 = int_to_ptr.hbm [resolvable:$true] %s138
      %144 = dma.vmem_to_hbm [thread:$0]  %s137, 256, %s139, [#allocation3], 128, 128, 8
    $region17: #{tpu_custom_call.1} parent=1 // pred_fallthru
      _
    // Predicated region
    $region18: #{tpu_custom_call.1} parent=1 // pred_check
      _
    $region19: #{tpu_custom_call.1} parent=1 // pred_check_branch
      %146 = sbr.rel (0) target = $region21
    $region20: #{tpu_custom_call.1} parent=1 // pred_region
      %148 = dma.done [#allocation3], 256
    $region21: #{tpu_custom_call.1} parent=1 // pred_fallthru
      _
    %149 = vsyncpa [#allocation3], 1

</llo_original>
